<compile_context>
chip_gen: v6e
topology: v6e:2x2x1
jax: 0.10.0
libtpu: 0.0.40
codegen_flags: <defaults>
</compile_context>

<pallas_src>
import jax
import jax.numpy as jnp
from jax.experimental import pallas as pl
from jax.experimental.pallas import tpu as pltpu


def _round_up(a, b):
    return ((a + b - 1) // b) * b


def _vmem_capacity_bytes():
    # Physical per-core VMEM (128 MiB on v5e/v6e, 64 MiB on v7x); conservative
    # fallback if the query is unavailable.
    try:
        return int(pltpu.get_tpu_info().vmem_capacity_bytes)
    except Exception:
        return 64 << 20


def _largest_tile(padded_extent, cap_lanes):
    """Largest multiple of 128 that divides `padded_extent` and is <= cap_lanes."""
    q = padded_extent // 128
    d_max = max(1, min(q, cap_lanes // 128))
    for d in range(d_max, 0, -1):
        if q % d == 0:
            return d * 128
    return 128


def _addon_kernel(x_ref, w1_ref, b1_ref, w2_ref, b2_ref, o_ref):
    # x_ref : (C_in, T)   activation tile in its *native* dtype (cast on-chip)
    # w1_ref: (C_p, C_in) conv1 weight, compute dtype, grid-resident
    # b1_ref: (C_p, 1)    conv1 bias, f32
    # w2_ref: (C_p, C_p)  conv2 weight, compute dtype, grid-resident
    # b2_ref: (C_p, 1)    conv2 bias, f32
    # o_ref : (C_p, T)    output tile
    x = x_ref[...].astype(w1_ref.dtype)      # on-chip cast; keeps MXU on the bf16 path

    # Conv1x1 #1 -> ReLU   (MXU matmul, f32 accumulate, f32 epilogue)
    h = jnp.dot(w1_ref[...], x, preferred_element_type=jnp.float32)
    h = jnp.maximum(h + b1_ref[...], 0.0)

    # Conv1x1 #2 -> Sigmoid.  sigmoid(z) == 0.5*(tanh(z/2)+1): one EUP
    # transcendental per element instead of exp + divide.
    y = jnp.dot(w2_ref[...], h.astype(w2_ref.dtype),
                preferred_element_type=jnp.float32)
    z = y + b2_ref[...]
    o_ref[...] = (0.5 * (jnp.tanh(0.5 * z) + 1.0)).astype(o_ref.dtype)


def addon_layers_forward(x_nchw, w1, b1, w2, b2, *, t_hw=None,
                         compute_dtype=jnp.bfloat16):
    """Fused AddonLayers forward (default 2-layer conv-relu-conv-sigmoid stack).

    x_nchw: (N, C_in, H, W)  activation, kept in its native dtype in HBM
    w1    : (C_p, C_in)      PyTorch Conv2d weight[:, :, 0, 0] of the first 1x1 conv
    b1    : (C_p,)
    w2    : (C_p, C_p)       second 1x1 conv weight
    b2    : (C_p,)
    t_hw  : optional upper bound on the spatial lane tile (multiple of 128)
    """
    N, C_in, H, W = x_nchw.shape
    C_p = w1.shape[0]
    out_dtype = x_nchw.dtype
    HW = H * W

    w1c = w1.astype(compute_dtype)
    w2c = w2.astype(compute_dtype)
    b1c = b1.reshape(C_p, 1).astype(jnp.float32)
    b2c = b2.reshape(C_p, 1).astype(jnp.float32)

    in_bytes = jnp.dtype(x_nchw.dtype).itemsize
    cbytes = jnp.dtype(compute_dtype).itemsize
    obytes = jnp.dtype(out_dtype).itemsize

    # ---- VMEM-derived spatial tile cap (generation dependent: larger tiles on
    # v5e/v6e's 128 MiB, honest 64 MiB cap on v7x). ----
    vmem_cap = _vmem_capacity_bytes()
    headroom = 6 << 20
    # Resident operands: weights are double-buffered by the pipeline (constant
    # index_map => never re-DMA'd, but two buffers exist); (C_p,1) f32 biases
    # lane-pad to 128.
    fixed = (2 * (C_p * C_in + C_p * C_p) * cbytes
             + 2 * 2 * _round_up(C_p, 8) * 128 * 4)
    # Per lane-column cost: double-buffered x tile (native dtype) and out tile,
    # plus ~3 f32 intermediates (h, z, epilogue temp).
    per_lane = 2 * C_in * in_bytes + 2 * C_p * obytes + 3 * C_p * 4
    budget = max(vmem_cap - headroom - fixed, per_lane * 128)
    cap_lanes = max(128, min((budget // per_lane) // 128 * 128, 2048))
    if t_hw is not None:
        cap_lanes = max(128, min(cap_lanes, (t_hw // 128) * 128))

    # ---- Layout choice: per-batch tiling (no transpose) vs. lane-packing the
    # batch into one spatial axis (one transpose pass each way, >=2x fewer
    # padded lanes).  ProtoPNet's 7x7 maps hit the packed path for N > 1. ----
    hw_pad = _round_up(HW, 128)
    m_total = N * HW
    m_pad = _round_up(m_total, 128)
    use_packed = (N > 1) and (HW % 128 != 0) and (N * hw_pad >= 2 * m_pad)

    if use_packed:
        # (N, C_in, HW) -> (C_in, N*HW): pay one transpose pass over x so the
        # kernel's MXU / epilogue / writeback work drops by the padding factor.
        x_in = jnp.transpose(x_nchw.reshape(N, C_in, HW), (1, 0, 2)).reshape(
            C_in, m_total)
        if m_pad != m_total:
            x_in = jnp.pad(x_in, ((0, 0), (0, m_pad - m_total)))
        tile = _largest_tile(m_pad, cap_lanes)
        grid = (m_pad // tile,)
        in_specs = [
            pl.BlockSpec((C_in, tile), lambda j: (0, j)),
            pl.BlockSpec((C_p, C_in), lambda j: (0, 0)),   # W1 resident
            pl.BlockSpec((C_p, 1), lambda j: (0, 0)),      # b1
            pl.BlockSpec((C_p, C_p), lambda j: (0, 0)),    # W2 resident
            pl.BlockSpec((C_p, 1), lambda j: (0, 0)),      # b2
        ]
        out_specs = pl.BlockSpec((C_p, tile), lambda j: (0, j))
        out_shape = jax.ShapeDtypeStruct((C_p, m_pad), out_dtype)
        dim_sem = ("parallel",)
    else:
        # Per-batch tiling straight off NCHW (free reshape, no transpose);
        # spatial padded only to the next multiple of 128, and the pad/slice
        # passes are skipped entirely when HW is already lane-aligned.
        x_in = x_nchw.reshape(N, C_in, HW)
        if hw_pad != HW:
            x_in = jnp.pad(x_in, ((0, 0), (0, 0), (0, hw_pad - HW)))
        tile = _largest_tile(hw_pad, cap_lanes)
        grid = (N, hw_pad // tile)
        in_specs = [
            pl.BlockSpec((None, C_in, tile), lambda n, j: (n, 0, j)),
            pl.BlockSpec((C_p, C_in), lambda n, j: (0, 0)),   # W1 resident
            pl.BlockSpec((C_p, 1), lambda n, j: (0, 0)),      # b1
            pl.BlockSpec((C_p, C_p), lambda n, j: (0, 0)),    # W2 resident
            pl.BlockSpec((C_p, 1), lambda n, j: (0, 0)),      # b2
        ]
        out_specs = pl.BlockSpec((None, C_p, tile), lambda n, j: (n, 0, j))
        out_shape = jax.ShapeDtypeStruct((N, C_p, hw_pad), out_dtype)
        dim_sem = ("parallel", "parallel")

    vmem_limit = int(min(vmem_cap,
                         max(fixed + per_lane * tile + headroom, 32 << 20)))

    cost = pl.CostEstimate(
        flops=int(2 * m_total * C_p * (C_in + C_p)),
        transcendentals=int(m_total * C_p),
        bytes_accessed=int(m_total * (C_in * in_bytes + C_p * obytes)
                           + (C_p * C_in + C_p * C_p) * cbytes + 2 * C_p * 4),
    )

    out = pl.pallas_call(
        _addon_kernel,
        out_shape=out_shape,
        grid_spec=pltpu.PrefetchScalarGridSpec(
            num_scalar_prefetch=0,
            grid=grid,
            in_specs=in_specs,
            out_specs=out_specs,
        ),
        compiler_params=pltpu.CompilerParams(
            dimension_semantics=dim_sem,
            vmem_limit_bytes=vmem_limit,
        ),
        cost_estimate=cost,
    )(x_in, w1c, b1c, w2c, b2c)

    # NOTE: padded lanes of the raw output hold sigmoid(...) of garbage inputs;
    # they are always sliced off below before anything can consume them.
    if use_packed:
        if m_pad != m_total:
            out = out[:, :m_total]
        out = out.reshape(C_p, N, HW).transpose(1, 0, 2)   # -> (N, C_p, HW)
    else:
        if hw_pad != HW:
            out = out[:, :, :HW]
    return out.reshape(N, C_p, H, W)


def _reference_forward(x_nchw, w1, b1, w2, b2):
    # Pure-JAX f32 reference of conv1x1 -> relu -> conv1x1 -> sigmoid.
    x = jnp.transpose(x_nchw, (0, 2, 3, 1)).astype(jnp.float32)        # NHWC
    h = jnp.maximum(jnp.einsum("nhwc,dc->nhwd", x, w1.astype(jnp.float32)) + b1, 0.0)
    y = jax.nn.sigmoid(jnp.einsum("nhwc,dc->nhwd", h, w2.astype(jnp.float32)) + b2)
    return jnp.transpose(y, (0, 3, 1, 2)).astype(x_nchw.dtype)


if __name__ == "__main__":
    key = jax.random.PRNGKey(0)
    kx, k1, kb1, k2, kb2, kx2 = jax.random.split(key, 6)

    # Small shapes consistent with the module (proto_channels = input_channels default).
    N, C_in, H, W = 2, 32, 16, 16
    C_p = C_in

    x = jax.random.normal(kx, (N, C_in, H, W), dtype=jnp.float32)
    # PyTorch Conv2d weight shape is (C_out, C_in, 1, 1); we keep the squeezed form.
    w1 = jax.random.normal(k1, (C_p, C_in), dtype=jnp.float32) * 0.1
    b1 = jax.random.normal(kb1, (C_p,), dtype=jnp.float32) * 0.1
    w2 = jax.random.normal(k2, (C_p, C_p), dtype=jnp.float32) * 0.1
    b2 = jax.random.normal(kb2, (C_p,), dtype=jnp.float32) * 0.1

    ref = _reference_forward(x, w1, b1, w2, b2)

    # f32 compute path: exact-ish match.  HW=256 is lane-aligned, so no pad/slice passes.
    out_f32 = jax.block_until_ready(
        addon_layers_forward(x, w1, b1, w2, b2, compute_dtype=jnp.float32))
    assert out_f32.shape == (N, C_p, H, W)
    assert jnp.allclose(out_f32, ref, atol=1e-5, rtol=1e-5)

    # bf16 compute path (default, MXU/HBM-optimized, x cast on-chip): loose tolerance.
    out_bf16 = jax.block_until_ready(
        addon_layers_forward(x, w1, b1, w2, b2, compute_dtype=jnp.bfloat16))
    assert jnp.allclose(out_bf16, ref, atol=2e-2, rtol=2e-2)

    # ProtoPNet-like 7x7 feature map with N > 1 -> lane-packed path (one
    # 128-lane tile for the whole batch instead of N heavily padded tiles).
    x7 = jax.random.normal(kx2, (N, C_in, 7, 7), dtype=jnp.float32)
    ref7 = _reference_forward(x7, w1, b1, w2, b2)
    out7 = jax.block_until_ready(
        addon_layers_forward(x7, w1, b1, w2, b2, compute_dtype=jnp.float32))
    assert out7.shape == (N, C_p, 7, 7)
    assert jnp.allclose(out7, ref7, atol=1e-5, rtol=1e-5)

    # N=1 exercises the per-batch path with lane padding (pad + slice retained
    # only because HW % 128 != 0).
    out7b = jax.block_until_ready(
        addon_layers_forward(x7[:1], w1, b1, w2, b2, compute_dtype=jnp.float32))
    assert jnp.allclose(out7b, ref7[:1], atol=1e-5, rtol=1e-5)

    print("KERNEL_OK")
</pallas_src>

<mosaic_0001>
module attributes {stable_mosaic.version = 11 : i64} {
  func.func @_addon_kernel(%arg0: i32, %arg1: i32, %arg2: memref<1x32x256xf32, #tpu.memory_space<vmem>>, %arg3: memref<32x32xf32, #tpu.memory_space<vmem>>, %arg4: memref<32x1xf32, #tpu.memory_space<vmem>>, %arg5: memref<32x32xf32, #tpu.memory_space<vmem>>, %arg6: memref<32x1xf32, #tpu.memory_space<vmem>>, %arg7: memref<1x32x256xf32, #tpu.memory_space<vmem>>) attributes {dimension_semantics = [#tpu.dimension_semantics<parallel>, #tpu.dimension_semantics<parallel>], iteration_bounds = array<i64: 2, 1>, scalar_prefetch = 0 : i64, scratch_operands = 0 : i64, tpu.core_type = #tpu.core_type<tc>, window_params = [{transform_indices = @transform_0, window_bounds = array<i64: 1, 32, 256>}, {pipeline_mode = #tpu.pipeline_mode<synchronous>, transform_indices = @transform_1, window_bounds = array<i64: 32, 32>}, {pipeline_mode = #tpu.pipeline_mode<synchronous>, transform_indices = @transform_2, window_bounds = array<i64: 32, 1>}, {pipeline_mode = #tpu.pipeline_mode<synchronous>, transform_indices = @transform_3, window_bounds = array<i64: 32, 32>}, {pipeline_mode = #tpu.pipeline_mode<synchronous>, transform_indices = @transform_4, window_bounds = array<i64: 32, 1>}, {transform_indices = @transform_5, window_bounds = array<i64: 1, 32, 256>}]} {
    %c0 = arith.constant 0 : index
    %c0_0 = arith.constant 0 : index
    %c0_1 = arith.constant 0 : index
    %0 = vector.load %arg2[%c0, %c0_0, %c0_1] : memref<1x32x256xf32, #tpu.memory_space<vmem>>, vector<1x32x256xf32>
    %1 = vector.shape_cast %0 : vector<1x32x256xf32> to vector<32x256xf32>
    %c0_2 = arith.constant 0 : index
    %c0_3 = arith.constant 0 : index
    %2 = vector.load %arg3[%c0_2, %c0_3] : memref<32x32xf32, #tpu.memory_space<vmem>>, vector<32x32xf32>
    %cst = arith.constant dense<0.000000e+00> : vector<32x256xf32>
    %3 = tpu.matmul %2, %1, %cst {dimension_numbers = #tpu.dot_dimension_numbers<[1], [0], [0], [1], [0, 0, 1, 1], [], []>} : vector<32x32xf32>, vector<32x256xf32>, vector<32x256xf32> -> vector<32x256xf32>
    %c0_4 = arith.constant 0 : index
    %c0_5 = arith.constant 0 : index
    %4 = vector.load %arg4[%c0_4, %c0_5] : memref<32x1xf32, #tpu.memory_space<vmem>>, vector<32x1xf32>
    %5 = vector.broadcast %4 : vector<32x1xf32> to vector<32x256xf32>
    %6 = arith.addf %3, %5 : vector<32x256xf32>
    %cst_6 = arith.constant 0.000000e+00 : f32
    %7 = vector.broadcast %cst_6 : f32 to vector<32x256xf32>
    %8 = arith.maximumf %6, %7 : vector<32x256xf32>
    %c0_7 = arith.constant 0 : index
    %c0_8 = arith.constant 0 : index
    %9 = vector.load %arg5[%c0_7, %c0_8] : memref<32x32xf32, #tpu.memory_space<vmem>>, vector<32x32xf32>
    %cst_9 = arith.constant dense<0.000000e+00> : vector<32x256xf32>
    %10 = tpu.matmul %9, %8, %cst_9 {dimension_numbers = #tpu.dot_dimension_numbers<[1], [0], [0], [1], [0, 0, 1, 1], [], []>} : vector<32x32xf32>, vector<32x256xf32>, vector<32x256xf32> -> vector<32x256xf32>
    %c0_10 = arith.constant 0 : index
    %c0_11 = arith.constant 0 : index
    %11 = vector.load %arg6[%c0_10, %c0_11] : memref<32x1xf32, #tpu.memory_space<vmem>>, vector<32x1xf32>
    %12 = vector.broadcast %11 : vector<32x1xf32> to vector<32x256xf32>
    %13 = arith.addf %10, %12 : vector<32x256xf32>
    %cst_12 = arith.constant 5.000000e-01 : f32
    %14 = vector.broadcast %cst_12 : f32 to vector<32x256xf32>
    %15 = arith.mulf %14, %13 : vector<32x256xf32>
    %16 = math.tanh %15 : vector<32x256xf32>
    %cst_13 = arith.constant 1.000000e+00 : f32
    %17 = vector.broadcast %cst_13 : f32 to vector<32x256xf32>
    %18 = arith.addf %16, %17 : vector<32x256xf32>
    %cst_14 = arith.constant 5.000000e-01 : f32
    %19 = vector.broadcast %cst_14 : f32 to vector<32x256xf32>
    %20 = arith.mulf %19, %18 : vector<32x256xf32>
    %c0_15 = arith.constant 0 : index
    %c0_16 = arith.constant 0 : index
    %c0_17 = arith.constant 0 : index
    %21 = vector.load %arg7[%c0_15, %c0_16, %c0_17] : memref<1x32x256xf32, #tpu.memory_space<vmem>>, vector<1x32x256xf32>
    %22 = vector.shape_cast %21 : vector<1x32x256xf32> to vector<32x256xf32>
    %23 = vector.shape_cast %20 : vector<32x256xf32> to vector<1x32x256xf32>
    tpu.vector_store %arg7[%c0_15, %c0_16, %c0_17], %23 {strides = array<i32>} : memref<1x32x256xf32, #tpu.memory_space<vmem>>, vector<1x32x256xf32>,
    return
  }
  func.func @transform_0(%arg0: i32, %arg1: i32) -> (i32, i32, i32) {
    %c0_i32 = arith.constant 0 : i32
    %c0_i32_0 = arith.constant 0 : i32
    return %arg0, %c0_i32, %arg1 : i32, i32, i32
  }
  func.func @transform_1(%arg0: i32, %arg1: i32) -> (i32, i32) {
    %c0_i32 = arith.constant 0 : i32
    %c0_i32_0 = arith.constant 0 : i32
    %c0_i32_1 = arith.constant 0 : i32
    return %c0_i32, %c0_i32_0 : i32, i32
  }
  func.func @transform_2(%arg0: i32, %arg1: i32) -> (i32, i32) {
    %c0_i32 = arith.constant 0 : i32
    %c0_i32_0 = arith.constant 0 : i32
    %c0_i32_1 = arith.constant 0 : i32
    return %c0_i32, %c0_i32_0 : i32, i32
  }
  func.func @transform_3(%arg0: i32, %arg1: i32) -> (i32, i32) {
    %c0_i32 = arith.constant 0 : i32
    %c0_i32_0 = arith.constant 0 : i32
    %c0_i32_1 = arith.constant 0 : i32
    return %c0_i32, %c0_i32_0 : i32, i32
  }
  func.func @transform_4(%arg0: i32, %arg1: i32) -> (i32, i32) {
    %c0_i32 = arith.constant 0 : i32
    %c0_i32_0 = arith.constant 0 : i32
    %c0_i32_1 = arith.constant 0 : i32
    return %c0_i32, %c0_i32_0 : i32, i32
  }
  func.func @transform_5(%arg0: i32, %arg1: i32) -> (i32, i32, i32) {
    %c0_i32 = arith.constant 0 : i32
    %c0_i32_0 = arith.constant 0 : i32
    return %arg0, %c0_i32, %arg1 : i32, i32, i32
  }
}

</mosaic_0001>

<llo_original>
// kernel: tpu_custom_call.1
$region0: #{tpu_custom_call.1}
  #allocation0 [shape = 'u32[]', space=smem, size = 0x4, offset = 0x4, fixed_abs, tag = 'smem constant byte address 0x4 - core index']
  #allocation1 [shape = 'u32[144,128]{1,0:T(1,128)}', space=vmem, size = 0x12000, scoped, tag = 'internal scratch']
  %s0 = inlined_call_operand.hbm [shape: f32[2,32,256], index: 0, kind: input, shape index: {}]
  %s1 = inlined_call_operand.vmem [shape: f32[32,32], index: 1, kind: input, shape index: {}]
  %s2 = inlined_call_operand.vmem [shape: f32[32,1], index: 2, kind: input, shape index: {}]
  %s3 = inlined_call_operand.vmem [shape: f32[32,32], index: 3, kind: input, shape index: {}]
  %s4 = inlined_call_operand.vmem [shape: f32[32,1], index: 4, kind: input, shape index: {}]
  %s5 = inlined_call_operand.hbm [shape: f32[2,32,256], index: 5, kind: output, shape index: {}]
  %s6 = sld [smem:[#allocation0]]
  $region57: #{tpu_custom_call.1} parent=0
    _
  %s8 = ssub.s32 1, %s6
  %s9 = scalar_select 0, %s8, %s6
  $region1: #{tpu_custom_call.1} parent=0
    #allocation2 [shape = 'u8[65536]{0}', space=vmem, size = 0x10000, scoped, tag = 'input window, operand 0']
    #allocation3 [shape = 's32[2]{0}', space=sflag, size = 0x8, scoped, tag = 'scoped memory for tpu_custom_call.1']
    #allocation4 [shape = 's32[2]{0}', space=sflag, size = 0x8, scoped, tag = 'scoped memory for tpu_custom_call.1']
    #allocation5 [shape = 'u8[65536]{0}', space=vmem, size = 0x10000, scoped, tag = 'output window, operand 0']
    %10 = vsyncpa [#allocation3], 0
    %s11 = scalar_lea.sflag [#allocation3], 1
    %12 = vsyncpa %s11, 0
    %13 = vsyncpa [#allocation4], 0
    %s14 = scalar_lea.sflag [#allocation4], 1
    %15 = vsyncpa %s14, 0
    loop: start=0, step=1, limit=4
    $region2: #{tpu_custom_call.1} parent=1 // loop_pre_header
      _
    $region3: #{tpu_custom_call.1} parent=1 // loop_header
      %s17 = sphi 0, %s21
      %p18 = scmp.ge.s32.totalorder %s17, 4
      %s24 = sphi 0, %s36
      %s25 = sphi 0, %s32
      %s26 = sphi 0, %s24
      %s27 = sphi 0, %s25
      %s28 = sphi 0, %s26
      %s29 = sphi 0, %s27
      %s41 = sphi 0, %s43
      %s44 = sphi 0, %s41
      %s45 = sphi 0, %s44
      %s61 = sphi 0, %s45
      %s65 = sphi 0, %s65
      %s67 = sphi 0, %s65
      %s68 = sphi 0, %s67
      %s82 = sphi 0, %s68
      %s86 = sphi 0, %s86
      %s88 = sphi 0, %s86
      %s89 = sphi 0, %s88
      %s103 = sphi 0, %s89
      %s107 = sphi 0, %s107
      %s109 = sphi 0, %s107
      %s110 = sphi 0, %s109
      %s124 = sphi 0, %s110
      %s128 = sphi 0, %s128
      %s130 = sphi 0, %s128
      %s131 = sphi 0, %s130
      %s145 = sphi 0, %s131
      %s153 = sphi 0, %s155
      %s156 = sphi 0, %s153
      %s157 = sphi 0, %s156
      %s173 = sphi 0, %s157
    $region4: #{tpu_custom_call.1} parent=1 // loop_header_branch
      %20 = sbr.rel (%p18) target = $region8
    $region5: #{tpu_custom_call.1} parent=1 // loop_body
      %s22 = ssub.s32 %s17, 1
      %s23 = ssub.s32 %s17, 2
      %s30 = sadd.s32 1, %s25
      %p31 = scmp.ge.s32.totalorder %s30, 1
      %s32 = scalar_select %p31, 0, %s30
      %s33 = sadd.s32 1, %s24
      %s34 = scalar_select %p31, %s33, %s24
      %p35 = scmp.ge.s32.totalorder %s34, 2
      %s36 = scalar_select %p35, 0, %s34
      %s37 = ssub.s32 %s24, %s36
      %s38 = ssub.s32 %s25, %s32
      %s39 = sor.u32 %s37, %s38
      %p40 = scmp.eq.s32.totalorder %s39, 0
      %s42 = sadd.s32 %s41, 1
      %s43 = scalar_select %p40, %s41, %s42
      %p46 = pneg %p40
      %p47 = scmp.eq.s32.totalorder %s17, 1
      %p48 = por %p46, %p47
      %p49 = scmp.ne.s32.totalorder %s41, %s44
      %p50 = scmp.eq.s32.totalorder %s17, 0
      %p51 = por %p49, %p50
      %p52 = scmp.ne.s32.totalorder %s41, %s44
      %p53 = scmp.eq.s32.totalorder %s22, 1
      %p54 = por %p52, %p53
      %p55 = scmp.ne.s32.totalorder %s44, %s45
      %p56 = scmp.eq.s32.totalorder %s22, 0
      %p57 = por %p55, %p56
      %p58 = scmp.ne.s32.totalorder %s44, %s45
      %p59 = scmp.eq.s32.totalorder %s23, 1
      %p60 = por %p58, %p59
      %p62 = scmp.ne.s32.totalorder %s45, %s61
      %p63 = scmp.eq.s32.totalorder %s23, 0
      %p64 = por %p62, %p63
      %s66 = sadd.s32 %s65, 1
      %p69 = scmp.eq.s32.totalorder %s17, 1
      %p70 = scmp.ne.s32.totalorder %s65, %s67
      %p71 = scmp.eq.s32.totalorder %s17, 0
      %p72 = por %p70, %p71
      %p73 = scmp.ne.s32.totalorder %s65, %s67
      %p74 = scmp.eq.s32.totalorder %s22, 1
      %p75 = por %p73, %p74
      %p76 = scmp.ne.s32.totalorder %s67, %s68
      %p77 = scmp.eq.s32.totalorder %s22, 0
      %p78 = por %p76, %p77
      %p79 = scmp.ne.s32.totalorder %s67, %s68
      %p80 = scmp.eq.s32.totalorder %s23, 1
      %p81 = por %p79, %p80
      %p83 = scmp.ne.s32.totalorder %s68, %s82
      %p84 = scmp.eq.s32.totalorder %s23, 0
      %p85 = por %p83, %p84
      %s87 = sadd.s32 %s86, 1
      %p90 = scmp.eq.s32.totalorder %s17, 1
      %p91 = scmp.ne.s32.totalorder %s86, %s88
      %p92 = scmp.eq.s32.totalorder %s17, 0
      %p93 = por %p91, %p92
      %p94 = scmp.ne.s32.totalorder %s86, %s88
      %p95 = scmp.eq.s32.totalorder %s22, 1
      %p96 = por %p94, %p95
      %p97 = scmp.ne.s32.totalorder %s88, %s89
      %p98 = scmp.eq.s32.totalorder %s22, 0
      %p99 = por %p97, %p98
      %p100 = scmp.ne.s32.totalorder %s88, %s89
      %p101 = scmp.eq.s32.totalorder %s23, 1
      %p102 = por %p100, %p101
      %p104 = scmp.ne.s32.totalorder %s89, %s103
      %p105 = scmp.eq.s32.totalorder %s23, 0
      %p106 = por %p104, %p105
      %s108 = sadd.s32 %s107, 1
      %p111 = scmp.eq.s32.totalorder %s17, 1
      %p112 = scmp.ne.s32.totalorder %s107, %s109
      %p113 = scmp.eq.s32.totalorder %s17, 0
      %p114 = por %p112, %p113
      %p115 = scmp.ne.s32.totalorder %s107, %s109
      %p116 = scmp.eq.s32.totalorder %s22, 1
      %p117 = por %p115, %p116
      %p118 = scmp.ne.s32.totalorder %s109, %s110
      %p119 = scmp.eq.s32.totalorder %s22, 0
      %p120 = por %p118, %p119
      %p121 = scmp.ne.s32.totalorder %s109, %s110
      %p122 = scmp.eq.s32.totalorder %s23, 1
      %p123 = por %p121, %p122
      %p125 = scmp.ne.s32.totalorder %s110, %s124
      %p126 = scmp.eq.s32.totalorder %s23, 0
      %p127 = por %p125, %p126
      %s129 = sadd.s32 %s128, 1
      %p132 = scmp.eq.s32.totalorder %s17, 1
      %p133 = scmp.ne.s32.totalorder %s128, %s130
      %p134 = scmp.eq.s32.totalorder %s17, 0
      %p135 = por %p133, %p134
      %p136 = scmp.ne.s32.totalorder %s128, %s130
      %p137 = scmp.eq.s32.totalorder %s22, 1
      %p138 = por %p136, %p137
      %p139 = scmp.ne.s32.totalorder %s130, %s131
      %p140 = scmp.eq.s32.totalorder %s22, 0
      %p141 = por %p139, %p140
      %p142 = scmp.ne.s32.totalorder %s130, %s131
      %p143 = scmp.eq.s32.totalorder %s23, 1
      %p144 = por %p142, %p143
      %p146 = scmp.ne.s32.totalorder %s131, %s145
      %p147 = scmp.eq.s32.totalorder %s23, 0
      %p148 = por %p146, %p147
      %s149 = ssub.s32 %s24, %s36
      %s150 = ssub.s32 %s25, %s32
      %s151 = sor.u32 %s149, %s150
      %p152 = scmp.eq.s32.totalorder %s151, 0
      %s154 = sadd.s32 %s153, 1
      %s155 = scalar_select %p152, %s153, %s154
      %p158 = pneg %p152
      %p159 = scmp.eq.s32.totalorder %s17, 1
      %p160 = por %p158, %p159
      %p161 = scmp.ne.s32.totalorder %s153, %s156
      %p162 = scmp.eq.s32.totalorder %s17, 0
      %p163 = por %p161, %p162
      %p164 = scmp.ne.s32.totalorder %s153, %s156
      %p165 = scmp.eq.s32.totalorder %s22, 1
      %p166 = por %p164, %p165
      %p167 = scmp.ne.s32.totalorder %s156, %s157
      %p168 = scmp.eq.s32.totalorder %s22, 0
      %p169 = por %p167, %p168
      %p170 = scmp.ne.s32.totalorder %s156, %s157
      %p171 = scmp.eq.s32.totalorder %s23, 1
      %p172 = por %p170, %p171
      %p174 = scmp.ne.s32.totalorder %s157, %s173
      %p175 = scmp.eq.s32.totalorder %s23, 0
      %p176 = por %p174, %p175
      %p177 = scmp.le.s32.totalorder 1, %s17
      %p178 = scmp.lt.s32.totalorder %s17, 3
      %p179 = pnand %p177, %p178
      %p180 = pneg %p179
      // Predicated region
      $region9: #{tpu_custom_call.1} parent=5 // pred_check
        _
      $region10: #{tpu_custom_call.1} parent=5 // pred_check_branch
        %182 = sbr.rel (%p179) target = $region12
      $region11: #{tpu_custom_call.1} parent=5 // pred_region
        %s183 = ssub.s32 %s17, 1
        // Predicated region
        $region13: #{tpu_custom_call.1} parent=11 // pred_check
          %p184 = pneg %p78
        $region14: #{tpu_custom_call.1} parent=11 // pred_check_branch
          %186 = sbr.rel (%p184) target = $region16
        $region15: #{tpu_custom_call.1} parent=11 // pred_region
          _
        $region16: #{tpu_custom_call.1} parent=11 // pred_fallthru
          _
        // Predicated region
        $region17: #{tpu_custom_call.1} parent=11 // pred_check
          %p187 = pneg %p99
        $region18: #{tpu_custom_call.1} parent=11 // pred_check_branch
          %189 = sbr.rel (%p187) target = $region20
        $region19: #{tpu_custom_call.1} parent=11 // pred_region
          _
        $region20: #{tpu_custom_call.1} parent=11 // pred_fallthru
          _
        // Predicated region
        $region21: #{tpu_custom_call.1} parent=11 // pred_check
          %p190 = pneg %p120
        $region22: #{tpu_custom_call.1} parent=11 // pred_check_branch
          %192 = sbr.rel (%p190) target = $region24
        $region23: #{tpu_custom_call.1} parent=11 // pred_region
          _
        $region24: #{tpu_custom_call.1} parent=11 // pred_fallthru
          _
        // Predicated region
        $region25: #{tpu_custom_call.1} parent=11 // pred_check
          %p193 = pneg %p141
        $region26: #{tpu_custom_call.1} parent=11 // pred_check_branch
          %195 = sbr.rel (%p193) target = $region28
        $region27: #{tpu_custom_call.1} parent=11 // pred_region
          _
        $region28: #{tpu_custom_call.1} parent=11 // pred_fallthru
          _
      $region12: #{tpu_custom_call.1} parent=5 // pred_fallthru
        _
      %p196 = scmp.lt.s32.totalorder %s17, 2
      // Predicated region
      $region29: #{tpu_custom_call.1} parent=5 // pred_check
        %p197 = pneg %p196
      $region30: #{tpu_custom_call.1} parent=5 // pred_check_branch
        %199 = sbr.rel (%p197) target = $region32
      $region31: #{tpu_custom_call.1} parent=5 // pred_region
        // Predicated region
        $region33: #{tpu_custom_call.1} parent=31 // pred_check
          %p200 = pneg %p51
        $region34: #{tpu_custom_call.1} parent=31 // pred_check_branch
          %202 = sbr.rel (%p200) target = $region36
        $region35: #{tpu_custom_call.1} parent=31 // pred_region
          %s203 = sand.u32 %s41, 1
          %s204 = scalar_lea.sflag [#allocation3], %s203
          %s205 = sand.u32 %s41, 1
          %s206 = smul.addr %s205, 64
          %s207 = scalar_lea.vmem [#allocation2], %s206
          %s208 = smul.u32 2, %s25
          %s210 = ssub.s32 1024, 1024
          %211 = vsyncadd %s204, %s210
          %s212 = smul.addr %s24, 8
          %s213 = sadd.s32 %s208, %s212
          %s214 = smul.addr %s213, 128
          %s215 = scalar_lea.hbm %s0, %s214
          %s216 = sshll.u32 %s207, 4
          %s217 = int_to_ptr.vmem [resolvable:$true] %s216
          %222 = dma.hbm_to_vmem [thread:$0]  %s215, 1024, %s217, %s204, 256, 256, 16
        $region36: #{tpu_custom_call.1} parent=31 // pred_fallthru
          _
      $region32: #{tpu_custom_call.1} parent=5 // pred_fallthru
        _
      %p223 = scmp.le.s32.totalorder 1, %s17
      %p224 = scmp.lt.s32.totalorder %s17, 3
      %p225 = pnand %p223, %p224
      %p226 = pneg %p225
      // Predicated region
      $region37: #{tpu_custom_call.1} parent=5 // pred_check
        _
      $region38: #{tpu_custom_call.1} parent=5 // pred_check_branch
        %228 = sbr.rel (%p225) target = $region40
      $region39: #{tpu_custom_call.1} parent=5 // pred_region
        %s229 = ssub.s32 %s17, 1
        %s230 = sand.u32 %s44, 1
        %s231 = scalar_lea.sflag [#allocation3], %s230
        %s232 = sand.u32 %s44, 1
        %s233 = smul.addr %s232, 64
        %s234 = scalar_lea.vmem [#allocation2], %s233
        // Predicated region
        $region41: #{tpu_custom_call.1} parent=39 // pred_check
          %p235 = pneg %p57
        $region42: #{tpu_custom_call.1} parent=39 // pred_check_branch
          %237 = sbr.rel (%p235) target = $region44
        $region43: #{tpu_custom_call.1} parent=39 // pred_region
          %238 = dma.done %s231, 1024
        $region44: #{tpu_custom_call.1} parent=39 // pred_fallthru
          _
        %s239 = sand.u32 %s44, 1
        %s240 = scalar_lea.sflag [#allocation3], %s239
        %s241 = sand.u32 %s44, 1
        %s242 = smul.addr %s241, 64
        %s243 = scalar_lea.vmem [#allocation2], %s242
        %p244 = pneg %p57
        %p245 = pneg %p54
        %p246 = pneg %p78
        %p247 = pneg %p75
        %p248 = pneg %p99
        %p249 = pneg %p96
        %p250 = pneg %p120
        %p251 = pneg %p117
        %p252 = pneg %p141
        %p253 = pneg %p138
        %p254 = pneg %p169
        %p255 = pneg %p166
        %s256 = sand.u32 %s156, 1
        %s257 = scalar_lea.sflag [#allocation4], %s256
        %s258 = sand.u32 %s156, 1
        %s259 = smul.addr %s258, 64
        %s260 = scalar_lea.vmem [#allocation5], %s259
        %s261 = smul.u32 2, %s27
        %s262 = smul.u32 2, %s27
        %v263 = vld [vmem:[%s234] sm:$0xff]
        %v264 = vld [vmem:[%s234 + $0x8] sm:$0xff]
        %v265 = vld [vmem:[%s234 + $0x10] sm:$0xff]
        %v266 = vld [vmem:[%s234 + $0x18] sm:$0xff]
        %v267 = vld [vmem:[%s234 + $0x20] sm:$0xff]
        %v268 = vld [vmem:[%s234 + $0x28] sm:$0xff]
        %v269 = vld [vmem:[%s234 + $0x30] sm:$0xff]
        %v270 = vld [vmem:[%s234 + $0x38] sm:$0xff]
        %v271 = vld [vmem:[%s1] sm:$0xff]
        %v272 = vld [vmem:[%s1 + $0x8] sm:$0xff]
        %v273 = vld [vmem:[%s1 + $0x10] sm:$0xff]
        %v274 = vld [vmem:[%s1 + $0x18] sm:$0xff]
        %v275 = vld [vmem:[%s2] sm:$0xff]
        %v276 = vld [vmem:[%s2 + $0x8] sm:$0xff]
        %v277 = vld [vmem:[%s2 + $0x10] sm:$0xff]
        %v278 = vld [vmem:[%s2 + $0x18] sm:$0xff]
        %280 = vset.pattern.permute.xlu0 0
        %281 = vperm.xlu0 %280, %v275
        %v282 = vpop.permute.xlu0 %281
        %285 = vset.pattern.permute.xlu0 0
        %286 = vperm.xlu0 %285, %v276
        %v287 = vpop.permute.xlu0 %286
        %290 = vset.pattern.permute.xlu0 0
        %291 = vperm.xlu0 %290, %v277
        %v292 = vpop.permute.xlu0 %291
        %295 = vset.pattern.permute.xlu0 0
        %296 = vperm.xlu0 %295, %v278
        %v297 = vpop.permute.xlu0 %296
        %vm299 = vcmask 261120
        %v301 = vsel %vm299, %v271, 0
        %v304 = vsel %vm299, %v272, 0
        %v307 = vsel %vm299, %v273, 0
        %v310 = vsel %vm299, %v274, 0
        %312 = vmatprep.subr.mxu0 0.0
        %313 = vmatpush1.msra.mxu0 0.0
        %314 = vmatprep.subr.mxu0 0.0
        %315 = vmatpush1.msra.mxu0 0.0
        %316 = vmatprep.subr.mxu0 0.0
        %317 = vmatpush1.msra.mxu0 0.0
        %318 = vmatprep.subr.mxu0 0.0
        %319 = vmatpush1.msra.mxu0 0.0
        %320 = vmatprep.subr.mxu0 0.0
        %321 = vmatpush1.msra.mxu0 0.0
        %322 = vmatprep.subr.mxu0 0.0
        %323 = vmatpush1.msra.mxu0 0.0
        %324 = vmatprep.subr.mxu0 0.0
        %325 = vmatpush1.msra.mxu0 0.0
        %326 = vmatprep.subr.mxu0 0.0
        %327 = vmatpush1.msra.mxu0 0.0
        %328 = vmatprep.subr.mxu0 0.0
        %329 = vmatpush1.msra.mxu0 0.0
        %330 = vmatprep.subr.mxu0 0.0
        %331 = vmatpush1.msra.mxu0 0.0
        %332 = vmatprep.subr.mxu0 0.0
        %333 = vmatpush1.msra.mxu0 0.0
        %334 = vmatprep.subr.mxu0 0.0
        %335 = vmatpush1.msra.mxu0 0.0
        %336 = vmatprep.subr.mxu0 %v270
        %337 = vmatpush1.msra.mxu0 %v269
        %338 = vmatprep.subr.mxu0 %v268
        %339 = vmatpush1.msra.mxu0 %v267
        %340 = vmatprep.subr.mxu0 %v266
        %341 = vmatpush1.msra.mxu0 %v265
        %342 = vmatprep.subr.mxu0 %v264
        %343 = vmatpush1.msra.mxu0 %v263
        %344 = vmatprep.subr.mxu0 0.0
        %345 = vmatpush2.msra.mxu0 0.0
        %346 = vmatprep.subr.mxu0 0.0
        %347 = vmatpush2.msra.mxu0 0.0
        %348 = vmatprep.subr.mxu0 0.0
        %349 = vmatpush2.msra.mxu0 0.0
        %350 = vmatprep.subr.mxu0 0.0
        %351 = vmatpush2.msra.mxu0 0.0
        %352 = vmatprep.subr.mxu0 0.0
        %353 = vmatpush2.msra.mxu0 0.0
        %354 = vmatprep.subr.mxu0 0.0
        %355 = vmatpush2.msra.mxu0 0.0
        %356 = vmatprep.subr.mxu0 0.0
        %357 = vmatpush2.msra.mxu0 0.0
        %358 = vmatprep.subr.mxu0 0.0
        %359 = vmatpush2.msra.mxu0 0.0
        %360 = vmatprep.subr.mxu0 0.0
        %361 = vmatpush2.msra.mxu0 0.0
        %362 = vmatprep.subr.mxu0 0.0
        %363 = vmatpush2.msra.mxu0 0.0
        %364 = vmatprep.subr.mxu0 0.0
        %365 = vmatpush2.msra.mxu0 0.0
        %366 = vmatprep.subr.mxu0 0.0
        %367 = vmatpush2.msra.mxu0 0.0
        %368 = vmatprep.subr.mxu0 0.0
        %369 = vmatpush2.msra.mxu0 0.0
        %370 = vmatprep.subr.mxu0 0.0
        %371 = vmatpush2.msra.mxu0 0.0
        %372 = vmatprep.subr.mxu0 0.0
        %373 = vmatpush2.msra.mxu0 0.0
        %374 = vmatprep.subr.mxu0 0.0
        %375 = vmatpush2.msra.mxu0 0.0
        %376 = vmatprep.mubr.f32.mxu0 0.0
        %377 = vmatmul.mubr.f32.gmra.mxu0 %v301
        %v378 = vpop.f32.mrf.mxu0
        %v379 = vadd.f32 %v282, %v378
        %v380 = vpop.f32.mrf.mxu0
        %v381 = vadd.f32 %v282, %v380
        %382 = vmatprep.mubr.f32.mxu0 0.0
        %383 = vmatmul.mubr.f32.gmra.mxu0 %v304
        %v384 = vpop.f32.mrf.mxu0
        %v385 = vadd.f32 %v287, %v384
        %v386 = vpop.f32.mrf.mxu0
        %v387 = vadd.f32 %v287, %v386
        %388 = vmatprep.mubr.f32.mxu0 0.0
        %389 = vmatmul.mubr.f32.gmra.mxu0 %v307
        %v390 = vpop.f32.mrf.mxu0
        %v391 = vadd.f32 %v292, %v390
        %v392 = vpop.f32.mrf.mxu0
        %v393 = vadd.f32 %v292, %v392
        %394 = vmatprep.mubr.f32.mxu0 0.0
        %395 = vmatmul.mubr.f32.gmra.mxu0 %v310
        %v396 = vpop.f32.mrf.mxu0
        %v397 = vadd.f32 %v297, %v396
        %v398 = vpop.f32.mrf.mxu0
        %v399 = vadd.f32 %v297, %v398
        %400 = vdwg.mxu0
        %v401 = vmax.f32 %v379, 0.0
        %v402 = vmax.f32 %v381, 0.0
        %v403 = vmax.f32 %v385, 0.0
        %v404 = vmax.f32 %v387, 0.0
        %v405 = vmax.f32 %v391, 0.0
        %v406 = vmax.f32 %v393, 0.0
        %v407 = vmax.f32 %v397, 0.0
        %v408 = vmax.f32 %v399, 0.0
        %v409 = vld [vmem:[%s3] sm:$0xff]
        %v410 = vld [vmem:[%s3 + $0x8] sm:$0xff]
        %v411 = vld [vmem:[%s3 + $0x10] sm:$0xff]
        %v412 = vld [vmem:[%s3 + $0x18] sm:$0xff]
        %v413 = vld [vmem:[%s4] sm:$0xff]
        %v414 = vld [vmem:[%s4 + $0x8] sm:$0xff]
        %v415 = vld [vmem:[%s4 + $0x10] sm:$0xff]
        %v416 = vld [vmem:[%s4 + $0x18] sm:$0xff]
        %418 = vset.pattern.permute.xlu0 0
        %419 = vperm.xlu0 %418, %v413
        %v420 = vpop.permute.xlu0 %419
        %423 = vset.pattern.permute.xlu0 0
        %424 = vperm.xlu0 %423, %v414
        %v425 = vpop.permute.xlu0 %424
        %428 = vset.pattern.permute.xlu0 0
        %429 = vperm.xlu0 %428, %v415
        %v430 = vpop.permute.xlu0 %429
        %433 = vset.pattern.permute.xlu0 0
        %434 = vperm.xlu0 %433, %v416
        %v435 = vpop.permute.xlu0 %434
        %v438 = vsel %vm299, %v409, 0
        %v441 = vsel %vm299, %v410, 0
        %v444 = vsel %vm299, %v411, 0
        %v447 = vsel %vm299, %v412, 0
        %449 = vmatprep.subr.mxu0 0.0
        %450 = vmatpush1.msra.mxu0 0.0
        %451 = vmatprep.subr.mxu0 0.0
        %452 = vmatpush1.msra.mxu0 0.0
        %453 = vmatprep.subr.mxu0 0.0
        %454 = vmatpush1.msra.mxu0 0.0
        %455 = vmatprep.subr.mxu0 0.0
        %456 = vmatpush1.msra.mxu0 0.0
        %457 = vmatprep.subr.mxu0 0.0
        %458 = vmatpush1.msra.mxu0 0.0
        %459 = vmatprep.subr.mxu0 0.0
        %460 = vmatpush1.msra.mxu0 0.0
        %461 = vmatprep.subr.mxu0 0.0
        %462 = vmatpush1.msra.mxu0 0.0
        %463 = vmatprep.subr.mxu0 0.0
        %464 = vmatpush1.msra.mxu0 0.0
        %465 = vmatprep.subr.mxu0 0.0
        %466 = vmatpush1.msra.mxu0 0.0
        %467 = vmatprep.subr.mxu0 0.0
        %468 = vmatpush1.msra.mxu0 0.0
        %469 = vmatprep.subr.mxu0 0.0
        %470 = vmatpush1.msra.mxu0 0.0
        %471 = vmatprep.subr.mxu0 0.0
        %472 = vmatpush1.msra.mxu0 0.0
        %473 = vmatprep.subr.mxu0 %v408
        %474 = vmatpush1.msra.mxu0 %v407
        %475 = vmatprep.subr.mxu0 %v406
        %476 = vmatpush1.msra.mxu0 %v405
        %477 = vmatprep.subr.mxu0 %v404
        %478 = vmatpush1.msra.mxu0 %v403
        %479 = vmatprep.subr.mxu0 %v402
        %480 = vmatpush1.msra.mxu0 %v401
        %481 = vmatprep.subr.mxu0 0.0
        %482 = vmatpush2.msra.mxu0 0.0
        %483 = vmatprep.subr.mxu0 0.0
        %484 = vmatpush2.msra.mxu0 0.0
        %485 = vmatprep.subr.mxu0 0.0
        %486 = vmatpush2.msra.mxu0 0.0
        %487 = vmatprep.subr.mxu0 0.0
        %488 = vmatpush2.msra.mxu0 0.0
        %489 = vmatprep.subr.mxu0 0.0
        %490 = vmatpush2.msra.mxu0 0.0
        %491 = vmatprep.subr.mxu0 0.0
        %492 = vmatpush2.msra.mxu0 0.0
        %493 = vmatprep.subr.mxu0 0.0
        %494 = vmatpush2.msra.mxu0 0.0
        %495 = vmatprep.subr.mxu0 0.0
        %496 = vmatpush2.msra.mxu0 0.0
        %497 = vmatprep.subr.mxu0 0.0
        %498 = vmatpush2.msra.mxu0 0.0
        %499 = vmatprep.subr.mxu0 0.0
        %500 = vmatpush2.msra.mxu0 0.0
        %501 = vmatprep.subr.mxu0 0.0
        %502 = vmatpush2.msra.mxu0 0.0
        %503 = vmatprep.subr.mxu0 0.0
        %504 = vmatpush2.msra.mxu0 0.0
        %505 = vmatprep.subr.mxu0 0.0
        %506 = vmatpush2.msra.mxu0 0.0
        %507 = vmatprep.subr.mxu0 0.0
        %508 = vmatpush2.msra.mxu0 0.0
        %509 = vmatprep.subr.mxu0 0.0
        %510 = vmatpush2.msra.mxu0 0.0
        %511 = vmatprep.subr.mxu0 0.0
        %512 = vmatpush2.msra.mxu0 0.0
        %513 = vmatprep.mubr.f32.mxu0 0.0
        %514 = vmatmul.mubr.f32.gmra.mxu0 %v438
        %v515 = vpop.f32.mrf.mxu0
        %v516 = vadd.f32 %v420, %v515
        %v517 = vpop.f32.mrf.mxu0
        %v518 = vadd.f32 %v420, %v517
        %519 = vmatprep.mubr.f32.mxu0 0.0
        %520 = vmatmul.mubr.f32.gmra.mxu0 %v441
        %v521 = vpop.f32.mrf.mxu0
        %v522 = vadd.f32 %v425, %v521
        %v523 = vpop.f32.mrf.mxu0
        %v524 = vadd.f32 %v425, %v523
        %525 = vmatprep.mubr.f32.mxu0 0.0
        %526 = vmatmul.mubr.f32.gmra.mxu0 %v444
        %v527 = vpop.f32.mrf.mxu0
        %v528 = vadd.f32 %v430, %v527
        %v529 = vpop.f32.mrf.mxu0
        %v530 = vadd.f32 %v430, %v529
        %531 = vmatprep.mubr.f32.mxu0 0.0
        %532 = vmatmul.mubr.f32.gmra.mxu0 %v447
        %v533 = vpop.f32.mrf.mxu0
        %v534 = vadd.f32 %v435, %v533
        %v535 = vpop.f32.mrf.mxu0
        %v536 = vadd.f32 %v435, %v535
        %537 = vdwg.mxu0
        %v538 = vmul.f32 %v516, 0.5
        %v539 = vmul.f32 %v518, 0.5
        %v540 = vmul.f32 %v522, 0.5
        %v541 = vmul.f32 %v524, 0.5
        %v542 = vmul.f32 %v528, 0.5
        %v543 = vmul.f32 %v530, 0.5
        %v544 = vmul.f32 %v534, 0.5
        %v545 = vmul.f32 %v536, 0.5
        %v546 = vtanh.pop %v538
        %v547 = vtanh.pop %v539
        %v548 = vtanh.pop %v540
        %v549 = vtanh.pop %v541
        %v550 = vtanh.pop %v542
        %v551 = vtanh.pop %v543
        %v552 = vtanh.pop %v544
        %v553 = vtanh.pop %v545
        %v554 = vadd.f32 %v546, 1.0
        %v555 = vadd.f32 %v547, 1.0
        %v556 = vadd.f32 %v548, 1.0
        %v557 = vadd.f32 %v549, 1.0
        %v558 = vadd.f32 %v550, 1.0
        %v559 = vadd.f32 %v551, 1.0
        %v560 = vadd.f32 %v552, 1.0
        %v561 = vadd.f32 %v553, 1.0
        %v562 = vmul.f32 %v554, 0.5
        %v563 = vmul.f32 %v555, 0.5
        %v564 = vmul.f32 %v556, 0.5
        %v565 = vmul.f32 %v557, 0.5
        %v566 = vmul.f32 %v558, 0.5
        %v567 = vmul.f32 %v559, 0.5
        %v568 = vmul.f32 %v560, 0.5
        %v569 = vmul.f32 %v561, 0.5
        %570 = vst [vmem:[%s260] sm:$0xff] %v562
        %571 = vst [vmem:[%s260 + $0x8] sm:$0xff] %v563
        %572 = vst [vmem:[%s260 + $0x10] sm:$0xff] %v564
        %573 = vst [vmem:[%s260 + $0x18] sm:$0xff] %v565
        %574 = vst [vmem:[%s260 + $0x20] sm:$0xff] %v566
        %575 = vst [vmem:[%s260 + $0x28] sm:$0xff] %v567
        %576 = vst [vmem:[%s260 + $0x30] sm:$0xff] %v568
        %577 = vst [vmem:[%s260 + $0x38] sm:$0xff] %v569
        %s578 = sand.u32 %s156, 1
        %s579 = scalar_lea.sflag [#allocation4], %s578
        %s580 = sand.u32 %s156, 1
        %s581 = smul.addr %s580, 64
        %s582 = scalar_lea.vmem [#allocation5], %s581
        // Predicated region
        $region45: #{tpu_custom_call.1} parent=39 // pred_check
          %p583 = pneg %p166
        $region46: #{tpu_custom_call.1} parent=39 // pred_check_branch
          %585 = sbr.rel (%p583) target = $region48
        $region47: #{tpu_custom_call.1} parent=39 // pred_region
          %s586 = smul.u32 2, %s27
          %s588 = ssub.s32 1024, 1024
          %589 = vsyncadd %s579, %s588
          %s590 = smul.addr %s26, 8
          %s591 = sadd.s32 %s586, %s590
          %s592 = smul.addr %s591, 128
          %s593 = scalar_lea.hbm %s5, %s592
          %s594 = sshll.u32 %s582, 4
          %s595 = int_to_ptr.vmem [resolvable:$true] %s594
          %600 = dma.vmem_to_hbm [thread:$0]  %s595, 1024, %s593, %s579, 256, 256, 16
        $region48: #{tpu_custom_call.1} parent=39 // pred_fallthru
          _
      $region40: #{tpu_custom_call.1} parent=5 // pred_fallthru
        _
      %p601 = scmp.le.s32.totalorder 2, %s17
      // Predicated region
      $region49: #{tpu_custom_call.1} parent=5 // pred_check
        %p602 = pneg %p601
      $region50: #{tpu_custom_call.1} parent=5 // pred_check_branch
        %604 = sbr.rel (%p602) target = $region52
      $region51: #{tpu_custom_call.1} parent=5 // pred_region
        %s605 = ssub.s32 %s17, 2
        // Predicated region
        $region53: #{tpu_custom_call.1} parent=51 // pred_check
          %p606 = pneg %p172
        $region54: #{tpu_custom_call.1} parent=51 // pred_check_branch
          %608 = sbr.rel (%p606) target = $region56
        $region55: #{tpu_custom_call.1} parent=51 // pred_region
          %s609 = sand.u32 %s157, 1
          %s610 = scalar_lea.sflag [#allocation4], %s609
          %s611 = sand.u32 %s157, 1
          %s612 = smul.addr %s611, 64
          %s613 = scalar_lea.vmem [#allocation5], %s612
          %614 = dma.done %s610, 1024
        $region56: #{tpu_custom_call.1} parent=51 // pred_fallthru
          _
      $region52: #{tpu_custom_call.1} parent=5 // pred_fallthru
        _
    $region6: #{tpu_custom_call.1} parent=1 // loop_footer
      %s21 = sadd.s32 1, %s17
    $region7: #{tpu_custom_call.1} parent=1 // loop_footer_branch
      %16 = sbr.rel target = $region3
    $region8: #{tpu_custom_call.1} parent=1 // loop_exit
      _
    %615 = vsyncpa [#allocation3], 1
    %s616 = scalar_lea.sflag [#allocation3], 1
    %617 = vsyncpa %s616, 1
    %618 = vsyncpa [#allocation4], 1
    %s619 = scalar_lea.sflag [#allocation4], 1
    %620 = vsyncpa %s619, 1

</llo_original>
